<compile_context>
chip_gen: v6e
topology: v6e:2x2x1
jax: 0.10.0
libtpu: 0.0.40
codegen_flags: <defaults>
</compile_context>

<pallas_src>
import jax
import jax.numpy as jnp
from jax.experimental import pallas as pl
from jax.experimental.pallas import tpu as pltpu

LN_EPS = 1e-5  # torch.nn.LayerNorm default


# --------------------------------------------------------------------------
# Kernel
# --------------------------------------------------------------------------
def _make_kernel(score_dtype):
    def kernel(q_ref, kn_ref, wq_ref, params_ref, out_ref):
        # q_ref:      (1, tq, D_in)  query-row tile of the current batch
        # kn_ref:     (1, N,  E)     precomputed LN(K @ Wk + bk), per batch
        # wq_ref:     (D_in, E)      fc_Q weight (already transposed to x@W)
        # params_ref: (3, E)         rows = [bq, gamma, beta]
        # out_ref:    (1, tq, N)

        # --- Q projection + LayerNorm (f32 math) --------------------------
        q = q_ref[0].astype(jnp.float32)                       # (tq, D_in)
        qe = jnp.dot(q, wq_ref[...], preferred_element_type=jnp.float32)
        qe = qe + params_ref[0:1, :]                            # + bq
        mu = jnp.mean(qe, axis=-1, keepdims=True)
        xc = qe - mu
        var = jnp.mean(xc * xc, axis=-1, keepdims=True)         # biased var
        qn = xc * jax.lax.rsqrt(var + LN_EPS) * params_ref[1:2, :] \
            + params_ref[2:3, :]                                # (tq, E)

        # --- Scores against precomputed LN(K): contract last dims ----------
        s = jax.lax.dot_general(
            qn.astype(score_dtype), kn_ref[0],
            dimension_numbers=(((1,), (1,)), ((), ())),
            preferred_element_type=jnp.float32)                 # (tq, N)

        # --- Numerically stable row softmax --------------------------------
        s = s - jnp.max(s, axis=-1, keepdims=True)
        e = jnp.exp(s)
        denom = jnp.sum(e, axis=-1, keepdims=True)
        p = e * pl.reciprocal(denom, approx=True)               # EUP slot

        out_ref[0] = p.astype(out_ref.dtype)

    return kernel


# --------------------------------------------------------------------------
# Wrapper
# --------------------------------------------------------------------------
def embed2graph_by_attention(Q, K, Wq, bq, Wk, bk, gamma, beta, *,
                             tq=None, out_dtype=jnp.float32,
                             score_in_bf16=False):
    """softmax(LN(Q Wq + bq) @ LN(K Wk + bk)^T, axis=-1).

    Q, K: (B, N, D_in). Wq, Wk: (D_in, E) (transpose of nn.Linear.weight).
    Set out_dtype=jnp.bfloat16 to halve the N^2 writeback traffic (biggest
    single lever on all TPU generations).  score_in_bf16=True additionally
    runs the score matmul in bf16 (worth it on v5e, costs ~1e-3 accuracy).
    """
    B, N, D_in = Q.shape
    E = Wq.shape[1]
    score_dtype = jnp.bfloat16 if score_in_bf16 else jnp.float32

    # --- K branch: Linear + LayerNorm once, in plain XLA (perf review #5) --
    # High precision here is cheap (O(B*N*D_in*E)) and keeps the softmax from
    # amplifying projection rounding.
    ke = jnp.einsum("bnd,de->bne",
                    K.astype(jnp.float32), Wk.astype(jnp.float32),
                    precision=jax.lax.Precision.HIGHEST) + bk.astype(jnp.float32)
    mu = jnp.mean(ke, axis=-1, keepdims=True)
    xc = ke - mu
    var = jnp.mean(xc * xc, axis=-1, keepdims=True)
    KN = (xc * jax.lax.rsqrt(var + LN_EPS) * gamma + beta).astype(score_dtype)

    # Fold the three small (E,) parameters into a single operand.
    params = jnp.stack([bq, gamma, beta], axis=0).astype(jnp.float32)  # (3, E)
    Wq32 = Wq.astype(jnp.float32)

    in_b = jnp.dtype(Q.dtype).itemsize
    out_b = jnp.dtype(out_dtype).itemsize
    kn_b = jnp.dtype(score_dtype).itemsize

    # --- VMEM budget from the actual chip (v7x: 64 MiB, v5e/v6e: 128 MiB) --
    try:
        vmem_cap = pltpu.get_tpu_info().vmem_capacity_bytes
    except Exception:
        vmem_cap = 64 << 20          # conservative fallback, safe everywhere
    budget = vmem_cap - (8 << 20)

    def footprint(t):
        return (2 * t * D_in * in_b          # Q tiles (double-buffered)
                + 2 * N * E * kn_b           # KN block (double-buffered)
                + 2 * t * N * out_b          # output tiles (double-buffered)
                + 6 * t * N * 4              # f32 score/softmax intermediates
                + 2 * D_in * E * 4           # Wq
                + 2 * 3 * E * 4)             # params

    # --- Pick the query-row tile from the budget (perf review #2) ----------
    if tq is None:
        candidates = ([N] if N <= 512 else []) + [512, 256, 128, 64, 32, 16, 8]
        tq = None
        for t in candidates:
            t = min(t, N)
            if footprint(t) <= budget:
                tq = t
                break
        if tq is None:
            # TODO(synk): online-softmax / key-tiled variant for very large N
            # (keeps VMEM bounded by tq*tk instead of tq*N).
            tq = min(N, 8)
    tq = min(tq, N)
    if tq < N:
        tq = max(8, (tq // 8) * 8)   # second-to-last block dim must be 8-aligned

    vmem_limit = max(16 << 20, int(footprint(tq) * 1.5) + (4 << 20))
    vmem_limit = min(vmem_limit, budget)

    grid = (B, pl.cdiv(N, tq))
    kernel = _make_kernel(score_dtype)

    out = pl.pallas_call(
        kernel,
        out_shape=jax.ShapeDtypeStruct((B, N, N), out_dtype),
        grid_spec=pltpu.PrefetchScalarGridSpec(
            num_scalar_prefetch=0,
            grid=grid,
            in_specs=[
                pl.BlockSpec((1, tq, D_in), lambda b, qi: (b, qi, 0)),  # Q tile
                pl.BlockSpec((1, N, E),     lambda b, qi: (b, 0, 0)),   # LN(K)
                pl.BlockSpec((D_in, E),     lambda b, qi: (0, 0)),      # Wq
                pl.BlockSpec((3, E),        lambda b, qi: (0, 0)),      # params
            ],
            out_specs=pl.BlockSpec((1, tq, N), lambda b, qi: (b, qi, 0)),
        ),
        compiler_params=pltpu.CompilerParams(
            # No cross-iteration state -> both axes parallel (v7x megacore).
            dimension_semantics=("parallel", "parallel"),
            vmem_limit_bytes=vmem_limit),
    )(Q, KN, Wq32, params)

    return out


# --------------------------------------------------------------------------
# Reference + test
# --------------------------------------------------------------------------
def _reference(Q, K, Wq, bq, Wk, bk, gamma, beta):
    hp = jax.lax.Precision.HIGHEST
    qe = jnp.einsum("bnd,de->bne", Q, Wq, precision=hp) + bq
    ke = jnp.einsum("bnd,de->bne", K, Wk, precision=hp) + bk

    def ln(x):
        mu = jnp.mean(x, axis=-1, keepdims=True)
        var = jnp.mean((x - mu) ** 2, axis=-1, keepdims=True)
        return (x - mu) / jnp.sqrt(var + LN_EPS) * gamma + beta

    qn, kn = ln(qe), ln(ke)
    s = jnp.einsum("bnd,bmd->bnm", qn, kn, precision=hp)
    return jax.nn.softmax(s, axis=-1)


if __name__ == "__main__":
    # Pin f32 matmul precision so kernel (in interpret mode) and reference
    # agree; score logits have std ~sqrt(E), so the softmax amplifies any
    # bf16-pass matmul rounding far beyond 1e-3.
    jax.config.update("jax_default_matmul_precision", "highest")

    B, N, D_in, E = 2, 8, 16, 32

    key = jax.random.PRNGKey(0)
    kq, kk, kwq, kbq, kwk, kbk = jax.random.split(key, 6)

    Q = jax.random.normal(kq, (B, N, D_in), dtype=jnp.float32)
    K = jax.random.normal(kk, (B, N, D_in), dtype=jnp.float32)

    # Synthetic parameters (shapes match nn.Linear / nn.LayerNorm defaults).
    Wq = jax.random.normal(kwq, (D_in, E), dtype=jnp.float32) * 0.1
    bq = jax.random.normal(kbq, (E,), dtype=jnp.float32) * 0.1
    Wk = jax.random.normal(kwk, (D_in, E), dtype=jnp.float32) * 0.1
    bk = jax.random.normal(kbk, (E,), dtype=jnp.float32) * 0.1
    gamma = jnp.ones((E,), dtype=jnp.float32)
    beta = jnp.zeros((E,), dtype=jnp.float32)

    out = embed2graph_by_attention(Q, K, Wq, bq, Wk, bk, gamma, beta)
    out = jax.block_until_ready(out)

    ref = _reference(Q, K, Wq, bq, Wk, bk, gamma, beta)
    assert out.shape == (B, N, N)
    # Tolerance covers pl.reciprocal(approx=True) (~2^-12 rel.) and the case
    # where the in-kernel f32 score matmul is executed via bf16 MXU passes.
    assert jnp.allclose(out, ref, atol=2e-2, rtol=2e-2), \
        f"max abs diff {float(jnp.max(jnp.abs(out - ref)))}"

    print("KERNEL_OK")
</pallas_src>

<mosaic_0001>
module attributes {stable_mosaic.version = 11 : i64} {
  func.func @kernel(%arg0: i32, %arg1: i32, %arg2: memref<1x8x16xf32, #tpu.memory_space<vmem>>, %arg3: memref<1x8x32xf32, #tpu.memory_space<vmem>>, %arg4: memref<16x32xf32, #tpu.memory_space<vmem>>, %arg5: memref<3x32xf32, #tpu.memory_space<vmem>>, %arg6: memref<1x8x8xf32, #tpu.memory_space<vmem>>) attributes {dimension_semantics = [#tpu.dimension_semantics<parallel>, #tpu.dimension_semantics<parallel>], iteration_bounds = array<i64: 2, 1>, scalar_prefetch = 0 : i64, scratch_operands = 0 : i64, tpu.core_type = #tpu.core_type<tc>, window_params = [{transform_indices = @transform_0, window_bounds = array<i64: 1, 8, 16>}, {transform_indices = @transform_1, window_bounds = array<i64: 1, 8, 32>}, {pipeline_mode = #tpu.pipeline_mode<synchronous>, transform_indices = @transform_2, window_bounds = array<i64: 16, 32>}, {pipeline_mode = #tpu.pipeline_mode<synchronous>, transform_indices = @transform_3, window_bounds = array<i64: 3, 32>}, {transform_indices = @transform_4, window_bounds = array<i64: 1, 8, 8>}]} {
    %c0 = arith.constant 0 : index
    %c0_0 = arith.constant 0 : index
    %c0_1 = arith.constant 0 : index
    %0 = vector.load %arg2[%c0, %c0_0, %c0_1] : memref<1x8x16xf32, #tpu.memory_space<vmem>>, vector<1x8x16xf32>
    %1 = vector.shape_cast %0 : vector<1x8x16xf32> to vector<8x16xf32>
    %c0_2 = arith.constant 0 : index
    %c0_3 = arith.constant 0 : index
    %2 = vector.load %arg4[%c0_2, %c0_3] : memref<16x32xf32, #tpu.memory_space<vmem>>, vector<16x32xf32>
    %cst = arith.constant dense<0.000000e+00> : vector<8x32xf32>
    %3 = tpu.matmul %1, %2, %cst {dimension_numbers = #tpu.dot_dimension_numbers<[1], [0], [0], [1], [0, 0, 1, 1], [], []>, precision = #tpu.contract_precision<fp32>} : vector<8x16xf32>, vector<16x32xf32>, vector<8x32xf32> -> vector<8x32xf32>
    %c0_4 = arith.constant 0 : index
    %c0_5 = arith.constant 0 : index
    %4 = vector.load %arg5[%c0_4, %c0_5] : memref<3x32xf32, #tpu.memory_space<vmem>>, vector<1x32xf32>
    %5 = vector.broadcast %4 : vector<1x32xf32> to vector<8x32xf32>
    %6 = arith.addf %3, %5 : vector<8x32xf32>
    %cst_6 = arith.constant dense<0.000000e+00> : vector<8xf32>
    %7 = vector.multi_reduction <add>, %6, %cst_6 [1] : vector<8x32xf32> to vector<8xf32>
    %8 = vector.shape_cast %7 : vector<8xf32> to vector<8x1xf32>
    %cst_7 = arith.constant 3.200000e+01 : f32
    %9 = vector.broadcast %cst_7 : f32 to vector<8x1xf32>
    %10 = arith.divf %8, %9 : vector<8x1xf32>
    %11 = vector.broadcast %10 : vector<8x1xf32> to vector<8x32xf32>
    %12 = arith.subf %6, %11 : vector<8x32xf32>
    %13 = arith.mulf %12, %12 : vector<8x32xf32>
    %cst_8 = arith.constant dense<0.000000e+00> : vector<8xf32>
    %14 = vector.multi_reduction <add>, %13, %cst_8 [1] : vector<8x32xf32> to vector<8xf32>
    %15 = vector.shape_cast %14 : vector<8xf32> to vector<8x1xf32>
    %cst_9 = arith.constant 3.200000e+01 : f32
    %16 = vector.broadcast %cst_9 : f32 to vector<8x1xf32>
    %17 = arith.divf %15, %16 : vector<8x1xf32>
    %cst_10 = arith.constant 9.99999974E-6 : f32
    %18 = vector.broadcast %cst_10 : f32 to vector<8x1xf32>
    %19 = arith.addf %17, %18 : vector<8x1xf32>
    %20 = math.rsqrt %19 : vector<8x1xf32>
    %21 = vector.broadcast %20 : vector<8x1xf32> to vector<8x32xf32>
    %22 = arith.mulf %12, %21 : vector<8x32xf32>
    %c1 = arith.constant 1 : index
    %c0_11 = arith.constant 0 : index
    %23 = vector.load %arg5[%c1, %c0_11] : memref<3x32xf32, #tpu.memory_space<vmem>>, vector<1x32xf32>
    %24 = vector.broadcast %23 : vector<1x32xf32> to vector<8x32xf32>
    %25 = arith.mulf %22, %24 : vector<8x32xf32>
    %c2 = arith.constant 2 : index
    %c0_12 = arith.constant 0 : index
    %26 = vector.load %arg5[%c2, %c0_12] : memref<3x32xf32, #tpu.memory_space<vmem>>, vector<1x32xf32>
    %27 = vector.broadcast %26 : vector<1x32xf32> to vector<8x32xf32>
    %28 = arith.addf %25, %27 : vector<8x32xf32>
    %c0_13 = arith.constant 0 : index
    %c0_14 = arith.constant 0 : index
    %c0_15 = arith.constant 0 : index
    %29 = vector.load %arg3[%c0_13, %c0_14, %c0_15] : memref<1x8x32xf32, #tpu.memory_space<vmem>>, vector<1x8x32xf32>
    %30 = vector.shape_cast %29 : vector<1x8x32xf32> to vector<8x32xf32>
    %cst_16 = arith.constant dense<0.000000e+00> : vector<8x8xf32>
    %31 = tpu.matmul %28, %30, %cst_16 {dimension_numbers = #tpu.dot_dimension_numbers<[1], [1], [0], [0], [0, 0, 1, 0], [], []>, precision = #tpu.contract_precision<fp32>} : vector<8x32xf32>, vector<8x32xf32>, vector<8x8xf32> -> vector<8x8xf32>
    %cst_17 = arith.constant dense<0xFF800000> : vector<8xf32>
    %32 = vector.multi_reduction <maximumf>, %31, %cst_17 [1] : vector<8x8xf32> to vector<8xf32>
    %33 = vector.shape_cast %32 : vector<8xf32> to vector<8x1xf32>
    %34 = vector.broadcast %33 : vector<8x1xf32> to vector<8x8xf32>
    %35 = arith.subf %31, %34 : vector<8x8xf32>
    %36 = math.exp %35 : vector<8x8xf32>
    %cst_18 = arith.constant dense<0.000000e+00> : vector<8xf32>
    %37 = vector.multi_reduction <add>, %36, %cst_18 [1] : vector<8x8xf32> to vector<8xf32>
    %38 = vector.shape_cast %37 : vector<8xf32> to vector<8x1xf32>
    %39 = tpu.reciprocal %38 {approx = true} : vector<8x1xf32> -> vector<8x1xf32>
    %40 = vector.broadcast %39 : vector<8x1xf32> to vector<8x8xf32>
    %41 = arith.mulf %36, %40 : vector<8x8xf32>
    %c0_19 = arith.constant 0 : index
    %c0_20 = arith.constant 0 : index
    %c0_21 = arith.constant 0 : index
    %42 = vector.load %arg6[%c0_19, %c0_20, %c0_21] : memref<1x8x8xf32, #tpu.memory_space<vmem>>, vector<1x8x8xf32>
    %43 = vector.shape_cast %42 : vector<1x8x8xf32> to vector<8x8xf32>
    %44 = vector.shape_cast %41 : vector<8x8xf32> to vector<1x8x8xf32>
    tpu.vector_store %arg6[%c0_19, %c0_20, %c0_21], %44 {strides = array<i32>} : memref<1x8x8xf32, #tpu.memory_space<vmem>>, vector<1x8x8xf32>,
    return
  }
  func.func @transform_0(%arg0: i32, %arg1: i32) -> (i32, i32, i32) {
    %c0_i32 = arith.constant 0 : i32
    %c0_i32_0 = arith.constant 0 : i32
    return %arg0, %arg1, %c0_i32 : i32, i32, i32
  }
  func.func @transform_1(%arg0: i32, %arg1: i32) -> (i32, i32, i32) {
    %c0_i32 = arith.constant 0 : i32
    %c0_i32_0 = arith.constant 0 : i32
    %c0_i32_1 = arith.constant 0 : i32
    return %arg0, %c0_i32, %c0_i32_0 : i32, i32, i32
  }
  func.func @transform_2(%arg0: i32, %arg1: i32) -> (i32, i32) {
    %c0_i32 = arith.constant 0 : i32
    %c0_i32_0 = arith.constant 0 : i32
    %c0_i32_1 = arith.constant 0 : i32
    return %c0_i32, %c0_i32_0 : i32, i32
  }
  func.func @transform_3(%arg0: i32, %arg1: i32) -> (i32, i32) {
    %c0_i32 = arith.constant 0 : i32
    %c0_i32_0 = arith.constant 0 : i32
    %c0_i32_1 = arith.constant 0 : i32
    return %c0_i32, %c0_i32_0 : i32, i32
  }
  func.func @transform_4(%arg0: i32, %arg1: i32) -> (i32, i32, i32) {
    %c0_i32 = arith.constant 0 : i32
    %c0_i32_0 = arith.constant 0 : i32
    return %arg0, %arg1, %c0_i32 : i32, i32, i32
  }
}

</mosaic_0001>

<llo_original>
// kernel: tpu_custom_call.1
$region0: #{tpu_custom_call.1}
  #allocation0 [shape = 'u32[]', space=smem, size = 0x4, offset = 0x4, fixed_abs, tag = 'smem constant byte address 0x4 - core index']
  #allocation1 [shape = 'u32[144,128]{1,0:T(1,128)}', space=vmem, size = 0x12000, scoped, tag = 'internal scratch']
  %s0 = inlined_call_operand.hbm [shape: f32[2,8,16], index: 0, kind: input, shape index: {}]
  %s1 = inlined_call_operand.hbm [shape: f32[2,8,32], index: 1, kind: input, shape index: {}]
  %s2 = inlined_call_operand.hbm [shape: f32[16,32], index: 2, kind: input, shape index: {}]
  %s3 = inlined_call_operand.vmem [shape: f32[3,32], index: 3, kind: input, shape index: {}]
  %s4 = inlined_call_operand.hbm [shape: f32[2,8,8], index: 4, kind: output, shape index: {}]
  %s5 = sld [smem:[#allocation0]]
  $region61: #{tpu_custom_call.1} parent=0
    _
  %s7 = ssub.s32 1, %s5
  %s8 = scalar_select 0, %s7, %s5
  $region1: #{tpu_custom_call.1} parent=0
    #allocation2 [shape = 'u8[8192]{0}', space=vmem, size = 0x2000, scoped, tag = 'input window, operand 0']
    #allocation3 [shape = 's32[2]{0}', space=sflag, size = 0x8, scoped, tag = 'scoped memory for tpu_custom_call.1']
    #allocation4 [shape = 's32[2]{0}', space=sflag, size = 0x8, scoped, tag = 'scoped memory for tpu_custom_call.1']
    #allocation5 [shape = 'u8[8192]{0}', space=vmem, size = 0x2000, scoped, tag = 'input window, operand 1']
    #allocation6 [shape = 's32[2]{0}', space=sflag, size = 0x8, scoped, tag = 'scoped memory for tpu_custom_call.1']
    #allocation7 [shape = 'u8[8192]{0}', space=vmem, size = 0x2000, scoped, tag = 'input window, operand 2, single buffered']
    #allocation8 [shape = 'u8[8192]{0}', space=vmem, size = 0x2000, scoped, tag = 'output window, operand 0']
    %9 = vsyncpa [#allocation3], 0
    %s10 = scalar_lea.sflag [#allocation3], 1
    %11 = vsyncpa %s10, 0
    %12 = vsyncpa [#allocation6], 0
    %s13 = scalar_lea.sflag [#allocation6], 1
    %14 = vsyncpa %s13, 0
    %15 = vsyncpa [#allocation4], 0
    %s16 = scalar_lea.sflag [#allocation4], 1
    %17 = vsyncpa %s16, 0
    loop: start=0, step=1, limit=4
    $region2: #{tpu_custom_call.1} parent=1 // loop_pre_header
      _
    $region3: #{tpu_custom_call.1} parent=1 // loop_header
      %s19 = sphi 0, %s23
      %p20 = scmp.ge.s32.totalorder %s19, 4
      %s26 = sphi 0, %s38
      %s27 = sphi 0, %s34
      %s28 = sphi 0, %s26
      %s29 = sphi 0, %s27
      %s30 = sphi 0, %s28
      %s31 = sphi 0, %s29
      %s43 = sphi 0, %s45
      %s46 = sphi 0, %s43
      %s47 = sphi 0, %s46
      %s63 = sphi 0, %s47
      %s69 = sphi 0, %s71
      %s72 = sphi 0, %s69
      %s73 = sphi 0, %s72
      %s89 = sphi 0, %s73
      %s93 = sphi 0, %s93
      %s95 = sphi 0, %s93
      %s96 = sphi 0, %s95
      %s110 = sphi 0, %s96
      %s114 = sphi 0, %s114
      %s116 = sphi 0, %s114
      %s117 = sphi 0, %s116
      %s131 = sphi 0, %s117
      %s139 = sphi 0, %s141
      %s142 = sphi 0, %s139
      %s143 = sphi 0, %s142
      %s159 = sphi 0, %s143
    $region4: #{tpu_custom_call.1} parent=1 // loop_header_branch
      %22 = sbr.rel (%p20) target = $region8
    $region5: #{tpu_custom_call.1} parent=1 // loop_body
      %s24 = ssub.s32 %s19, 1
      %s25 = ssub.s32 %s19, 2
      %s32 = sadd.s32 1, %s27
      %p33 = scmp.ge.s32.totalorder %s32, 1
      %s34 = scalar_select %p33, 0, %s32
      %s35 = sadd.s32 1, %s26
      %s36 = scalar_select %p33, %s35, %s26
      %p37 = scmp.ge.s32.totalorder %s36, 2
      %s38 = scalar_select %p37, 0, %s36
      %s39 = ssub.s32 %s26, %s38
      %s40 = ssub.s32 %s27, %s34
      %s41 = sor.u32 %s39, %s40
      %p42 = scmp.eq.s32.totalorder %s41, 0
      %s44 = sadd.s32 %s43, 1
      %s45 = scalar_select %p42, %s43, %s44
      %p48 = pneg %p42
      %p49 = scmp.eq.s32.totalorder %s19, 1
      %p50 = por %p48, %p49
      %p51 = scmp.ne.s32.totalorder %s43, %s46
      %p52 = scmp.eq.s32.totalorder %s19, 0
      %p53 = por %p51, %p52
      %p54 = scmp.ne.s32.totalorder %s43, %s46
      %p55 = scmp.eq.s32.totalorder %s24, 1
      %p56 = por %p54, %p55
      %p57 = scmp.ne.s32.totalorder %s46, %s47
      %p58 = scmp.eq.s32.totalorder %s24, 0
      %p59 = por %p57, %p58
      %p60 = scmp.ne.s32.totalorder %s46, %s47
      %p61 = scmp.eq.s32.totalorder %s25, 1
      %p62 = por %p60, %p61
      %p64 = scmp.ne.s32.totalorder %s47, %s63
      %p65 = scmp.eq.s32.totalorder %s25, 0
      %p66 = por %p64, %p65
      %s67 = ssub.s32 %s26, %s38
      %p68 = scmp.eq.s32.totalorder %s67, 0
      %s70 = sadd.s32 %s69, 1
      %s71 = scalar_select %p68, %s69, %s70
      %p74 = pneg %p68
      %p75 = scmp.eq.s32.totalorder %s19, 1
      %p76 = por %p74, %p75
      %p77 = scmp.ne.s32.totalorder %s69, %s72
      %p78 = scmp.eq.s32.totalorder %s19, 0
      %p79 = por %p77, %p78
      %p80 = scmp.ne.s32.totalorder %s69, %s72
      %p81 = scmp.eq.s32.totalorder %s24, 1
      %p82 = por %p80, %p81
      %p83 = scmp.ne.s32.totalorder %s72, %s73
      %p84 = scmp.eq.s32.totalorder %s24, 0
      %p85 = por %p83, %p84
      %p86 = scmp.ne.s32.totalorder %s72, %s73
      %p87 = scmp.eq.s32.totalorder %s25, 1
      %p88 = por %p86, %p87
      %p90 = scmp.ne.s32.totalorder %s73, %s89
      %p91 = scmp.eq.s32.totalorder %s25, 0
      %p92 = por %p90, %p91
      %s94 = sadd.s32 %s93, 1
      %p97 = scmp.eq.s32.totalorder %s19, 1
      %p98 = scmp.ne.s32.totalorder %s93, %s95
      %p99 = scmp.eq.s32.totalorder %s19, 0
      %p100 = por %p98, %p99
      %p101 = scmp.ne.s32.totalorder %s93, %s95
      %p102 = scmp.eq.s32.totalorder %s24, 1
      %p103 = por %p101, %p102
      %p104 = scmp.ne.s32.totalorder %s95, %s96
      %p105 = scmp.eq.s32.totalorder %s24, 0
      %p106 = por %p104, %p105
      %p107 = scmp.ne.s32.totalorder %s95, %s96
      %p108 = scmp.eq.s32.totalorder %s25, 1
      %p109 = por %p107, %p108
      %p111 = scmp.ne.s32.totalorder %s96, %s110
      %p112 = scmp.eq.s32.totalorder %s25, 0
      %p113 = por %p111, %p112
      %s115 = sadd.s32 %s114, 1
      %p118 = scmp.eq.s32.totalorder %s19, 1
      %p119 = scmp.ne.s32.totalorder %s114, %s116
      %p120 = scmp.eq.s32.totalorder %s19, 0
      %p121 = por %p119, %p120
      %p122 = scmp.ne.s32.totalorder %s114, %s116
      %p123 = scmp.eq.s32.totalorder %s24, 1
      %p124 = por %p122, %p123
      %p125 = scmp.ne.s32.totalorder %s116, %s117
      %p126 = scmp.eq.s32.totalorder %s24, 0
      %p127 = por %p125, %p126
      %p128 = scmp.ne.s32.totalorder %s116, %s117
      %p129 = scmp.eq.s32.totalorder %s25, 1
      %p130 = por %p128, %p129
      %p132 = scmp.ne.s32.totalorder %s117, %s131
      %p133 = scmp.eq.s32.totalorder %s25, 0
      %p134 = por %p132, %p133
      %s135 = ssub.s32 %s26, %s38
      %s136 = ssub.s32 %s27, %s34
      %s137 = sor.u32 %s135, %s136
      %p138 = scmp.eq.s32.totalorder %s137, 0
      %s140 = sadd.s32 %s139, 1
      %s141 = scalar_select %p138, %s139, %s140
      %p144 = pneg %p138
      %p145 = scmp.eq.s32.totalorder %s19, 1
      %p146 = por %p144, %p145
      %p147 = scmp.ne.s32.totalorder %s139, %s142
      %p148 = scmp.eq.s32.totalorder %s19, 0
      %p149 = por %p147, %p148
      %p150 = scmp.ne.s32.totalorder %s139, %s142
      %p151 = scmp.eq.s32.totalorder %s24, 1
      %p152 = por %p150, %p151
      %p153 = scmp.ne.s32.totalorder %s142, %s143
      %p154 = scmp.eq.s32.totalorder %s24, 0
      %p155 = por %p153, %p154
      %p156 = scmp.ne.s32.totalorder %s142, %s143
      %p157 = scmp.eq.s32.totalorder %s25, 1
      %p158 = por %p156, %p157
      %p160 = scmp.ne.s32.totalorder %s143, %s159
      %p161 = scmp.eq.s32.totalorder %s25, 0
      %p162 = por %p160, %p161
      %p163 = scmp.le.s32.totalorder 1, %s19
      %p164 = scmp.lt.s32.totalorder %s19, 3
      %p165 = pnand %p163, %p164
      %p166 = pneg %p165
      // Predicated region
      $region9: #{tpu_custom_call.1} parent=5 // pred_check
        _
      $region10: #{tpu_custom_call.1} parent=5 // pred_check_branch
        %168 = sbr.rel (%p165) target = $region12
      $region11: #{tpu_custom_call.1} parent=5 // pred_region
        %s169 = ssub.s32 %s19, 1
        // Predicated region
        $region13: #{tpu_custom_call.1} parent=11 // pred_check
          %p170 = pneg %p106
        $region14: #{tpu_custom_call.1} parent=11 // pred_check_branch
          %172 = sbr.rel (%p170) target = $region16
        $region15: #{tpu_custom_call.1} parent=11 // pred_region
          %s174 = ssub.s32 256, 256
          %175 = vsyncadd [#allocation6], %s174
          %s176 = sshll.u32 [#allocation7], 4
          %s177 = int_to_ptr.vmem [resolvable:$true] %s176
          %182 = dma.hbm_to_vmem [thread:$0]  %s2, 256, %s177, [#allocation6], 128, 128, 8
        $region16: #{tpu_custom_call.1} parent=11 // pred_fallthru
          _
        // Predicated region
        $region17: #{tpu_custom_call.1} parent=11 // pred_check
          %p183 = pneg %p127
        $region18: #{tpu_custom_call.1} parent=11 // pred_check_branch
          %185 = sbr.rel (%p183) target = $region20
        $region19: #{tpu_custom_call.1} parent=11 // pred_region
          _
        $region20: #{tpu_custom_call.1} parent=11 // pred_fallthru
          _
      $region12: #{tpu_custom_call.1} parent=5 // pred_fallthru
        _
      %p186 = scmp.lt.s32.totalorder %s19, 2
      // Predicated region
      $region21: #{tpu_custom_call.1} parent=5 // pred_check
        %p187 = pneg %p186
      $region22: #{tpu_custom_call.1} parent=5 // pred_check_branch
        %189 = sbr.rel (%p187) target = $region24
      $region23: #{tpu_custom_call.1} parent=5 // pred_region
        // Predicated region
        $region25: #{tpu_custom_call.1} parent=23 // pred_check
          %p190 = pneg %p53
        $region26: #{tpu_custom_call.1} parent=23 // pred_check_branch
          %192 = sbr.rel (%p190) target = $region28
        $region27: #{tpu_custom_call.1} parent=23 // pred_region
          %s193 = sand.u32 %s43, 1
          %s194 = scalar_lea.sflag [#allocation3], %s193
          %s195 = sand.u32 %s43, 1
          %s196 = smul.addr %s195, 8
          %s197 = scalar_lea.vmem [#allocation2], %s196
          %s199 = ssub.s32 128, 128
          %200 = vsyncadd %s194, %s199
          %s201 = sadd.s32 %s27, %s26
          %s202 = smul.addr %s201, 128
          %s203 = scalar_lea.hbm %s0, %s202
          %s205 = sshll.u32 %s197, 4
          %s206 = int_to_ptr.vmem [resolvable:$true] %s205
          %208 = dma.hbm_to_vmem [thread:$0]  %s203, 128, %s206, %s194
        $region28: #{tpu_custom_call.1} parent=23 // pred_fallthru
          _
        // Predicated region
        $region29: #{tpu_custom_call.1} parent=23 // pred_check
          %p209 = pneg %p79
        $region30: #{tpu_custom_call.1} parent=23 // pred_check_branch
          %211 = sbr.rel (%p209) target = $region32
        $region31: #{tpu_custom_call.1} parent=23 // pred_region
          %s212 = sand.u32 %s19, 1
          %s213 = scalar_lea.sflag [#allocation6], %s212
          %s214 = sand.u32 %s69, 1
          %s215 = smul.addr %s214, 8
          %s216 = scalar_lea.vmem [#allocation5], %s215
          %s218 = ssub.s32 128, 128
          %219 = vsyncadd %s213, %s218
          %s220 = smul.addr %s26, 128
          %s221 = scalar_lea.hbm %s1, %s220
          %s223 = sshll.u32 %s216, 4
          %s224 = int_to_ptr.vmem [resolvable:$true] %s223
          %226 = dma.hbm_to_vmem [thread:$0]  %s221, 128, %s224, %s213
        $region32: #{tpu_custom_call.1} parent=23 // pred_fallthru
          _
      $region24: #{tpu_custom_call.1} parent=5 // pred_fallthru
        _
      %p227 = scmp.le.s32.totalorder 1, %s19
      %p228 = scmp.lt.s32.totalorder %s19, 3
      %p229 = pnand %p227, %p228
      %p230 = pneg %p229
      // Predicated region
      $region33: #{tpu_custom_call.1} parent=5 // pred_check
        _
      $region34: #{tpu_custom_call.1} parent=5 // pred_check_branch
        %232 = sbr.rel (%p229) target = $region36
      $region35: #{tpu_custom_call.1} parent=5 // pred_region
        %s233 = ssub.s32 %s19, 1
        %s234 = sand.u32 %s46, 1
        %s235 = scalar_lea.sflag [#allocation3], %s234
        %s236 = sand.u32 %s46, 1
        %s237 = smul.addr %s236, 8
        %s238 = scalar_lea.vmem [#allocation2], %s237
        // Predicated region
        $region37: #{tpu_custom_call.1} parent=35 // pred_check
          %p239 = pneg %p59
        $region38: #{tpu_custom_call.1} parent=35 // pred_check_branch
          %241 = sbr.rel (%p239) target = $region40
        $region39: #{tpu_custom_call.1} parent=35 // pred_region
          %242 = dma.done %s235, 128
        $region40: #{tpu_custom_call.1} parent=35 // pred_fallthru
          _
        %s243 = sand.u32 %s24, 1
        %s244 = scalar_lea.sflag [#allocation6], %s243
        %s245 = sand.u32 %s72, 1
        %s246 = smul.addr %s245, 8
        %s247 = scalar_lea.vmem [#allocation5], %s246
        // Predicated region
        $region41: #{tpu_custom_call.1} parent=35 // pred_check
          %p248 = pneg %p85
        $region42: #{tpu_custom_call.1} parent=35 // pred_check_branch
          %250 = sbr.rel (%p248) target = $region44
        $region43: #{tpu_custom_call.1} parent=35 // pred_region
          %251 = dma.done %s244, 128
        $region44: #{tpu_custom_call.1} parent=35 // pred_fallthru
          _
        // Predicated region
        $region45: #{tpu_custom_call.1} parent=35 // pred_check
          %p252 = pneg %p106
        $region46: #{tpu_custom_call.1} parent=35 // pred_check_branch
          %254 = sbr.rel (%p252) target = $region48
        $region47: #{tpu_custom_call.1} parent=35 // pred_region
          %255 = dma.done [#allocation6], 256
        $region48: #{tpu_custom_call.1} parent=35 // pred_fallthru
          _
        %s256 = sand.u32 %s46, 1
        %s257 = scalar_lea.sflag [#allocation3], %s256
        %s258 = sand.u32 %s46, 1
        %s259 = smul.addr %s258, 8
        %s260 = scalar_lea.vmem [#allocation2], %s259
        %p261 = pneg %p59
        %p262 = pneg %p56
        %s263 = sand.u32 %s24, 1
        %s264 = scalar_lea.sflag [#allocation6], %s263
        %s265 = sand.u32 %s72, 1
        %s266 = smul.addr %s265, 8
        %s267 = scalar_lea.vmem [#allocation5], %s266
        %p268 = pneg %p85
        %p269 = pneg %p82
        %p270 = pneg %p106
        %p271 = pneg %p103
        %p272 = pneg %p127
        %p273 = pneg %p124
        %p274 = pneg %p155
        %p275 = pneg %p152
        %s276 = sand.u32 %s142, 1
        %s277 = scalar_lea.sflag [#allocation4], %s276
        %s278 = sand.u32 %s142, 1
        %s279 = smul.addr %s278, 8
        %s280 = scalar_lea.vmem [#allocation8], %s279
        %v281 = vld [vmem:[%s238] sm:$0xff]
        %v282 = vld [vmem:[#allocation7] sm:$0xff]
        %v283 = vld [vmem:[#allocation7 + $0x8] sm:$0xff]
        %v284 = vld [vmem:[%s3] sm:$0x1]
        %v285 = vlaneseq
        %v286 = vshrl.u32 %v285, 7
        %v287 = vsub.s32 0, %v286
        %v288 = vrot.slane %v284, %v287
        %vm289 = vcmask 130048
        %v291 = vsel %vm289, %v281, 0
        %293 = vmatprep.subr.mxu0 0.0
        %294 = vmatpush1.msra.mxu0 0.0
        %295 = vmatprep.subr.mxu0 0.0
        %296 = vmatpush1.msra.mxu0 0.0
        %297 = vmatprep.subr.mxu0 0.0
        %298 = vmatpush1.msra.mxu0 0.0
        %299 = vmatprep.subr.mxu0 0.0
        %300 = vmatpush1.msra.mxu0 0.0
        %301 = vmatprep.subr.mxu0 0.0
        %302 = vmatpush1.msra.mxu0 0.0
        %303 = vmatprep.subr.mxu0 0.0
        %304 = vmatpush1.msra.mxu0 0.0
        %305 = vmatprep.subr.mxu0 0.0
        %306 = vmatpush1.msra.mxu0 0.0
        %307 = vmatprep.subr.mxu0 0.0
        %308 = vmatpush1.msra.mxu0 0.0
        %309 = vmatprep.subr.mxu0 0.0
        %310 = vmatpush1.msra.mxu0 0.0
        %311 = vmatprep.subr.mxu0 0.0
        %312 = vmatpush1.msra.mxu0 0.0
        %313 = vmatprep.subr.mxu0 0.0
        %314 = vmatpush1.msra.mxu0 0.0
        %315 = vmatprep.subr.mxu0 0.0
        %316 = vmatpush1.msra.mxu0 0.0
        %317 = vmatprep.subr.mxu0 0.0
        %318 = vmatpush1.msra.mxu0 0.0
        %319 = vmatprep.subr.mxu0 0.0
        %320 = vmatpush1.msra.mxu0 0.0
        %321 = vmatprep.subr.mxu0 0.0
        %v322 = vand.u32 %v283, 4294901760
        %323 = vmatpush1.msra.mxu0 %v322
        %324 = vmatprep.subr.mxu0 0.0
        %v325 = vand.u32 %v282, 4294901760
        %326 = vmatpush1.msra.mxu0 %v325
        %327 = vmatprep.subr.mxu0 0.0
        %328 = vmatpush2.msra.mxu0 0.0
        %329 = vmatprep.subr.mxu0 0.0
        %330 = vmatpush2.msra.mxu0 0.0
        %331 = vmatprep.subr.mxu0 0.0
        %332 = vmatpush2.msra.mxu0 0.0
        %333 = vmatprep.subr.mxu0 0.0
        %334 = vmatpush2.msra.mxu0 0.0
        %335 = vmatprep.subr.mxu0 0.0
        %336 = vmatpush2.msra.mxu0 0.0
        %337 = vmatprep.subr.mxu0 0.0
        %338 = vmatpush2.msra.mxu0 0.0
        %339 = vmatprep.subr.mxu0 0.0
        %340 = vmatpush2.msra.mxu0 0.0
        %341 = vmatprep.subr.mxu0 0.0
        %342 = vmatpush2.msra.mxu0 0.0
        %343 = vmatprep.subr.mxu0 0.0
        %344 = vmatpush2.msra.mxu0 0.0
        %345 = vmatprep.subr.mxu0 0.0
        %346 = vmatpush2.msra.mxu0 0.0
        %347 = vmatprep.subr.mxu0 0.0
        %348 = vmatpush2.msra.mxu0 0.0
        %349 = vmatprep.subr.mxu0 0.0
        %350 = vmatpush2.msra.mxu0 0.0
        %351 = vmatprep.subr.mxu0 0.0
        %352 = vmatpush2.msra.mxu0 0.0
        %353 = vmatprep.subr.mxu0 0.0
        %354 = vmatpush2.msra.mxu0 0.0
        %355 = vmatprep.subr.mxu0 0.0
        %356 = vmatpush2.msra.mxu0 0.0
        %357 = vmatprep.subr.mxu0 0.0
        %358 = vmatpush2.msra.mxu0 0.0
        %359 = vmatprep.mubr.f32.mxu0 0.0
        %v360 = vand.u32 %v291, 4294901760
        %v361 = vsub.f32 %v291, %v360
        %v362 = vand.u32 %v361, 4294901760
        %v363 = vsub.f32 %v361, %v362
        %v364 = vand.u32 %v363, 4294901760
        %365 = vmatmul.mubr.f32.gmra.mxu0 %v364
        %v366 = vpop.f32.mrf.mxu0
        %v367 = vadd.f32 %v288, %v366
        %v368 = vpop.f32.mrf.mxu0
        %369 = vdwg.mxu0
        %370 = vmatprep.subr.mxu0 0.0
        %371 = vmatpush1.msra.mxu0 0.0
        %372 = vmatprep.subr.mxu0 0.0
        %373 = vmatpush1.msra.mxu0 0.0
        %374 = vmatprep.subr.mxu0 0.0
        %375 = vmatpush1.msra.mxu0 0.0
        %376 = vmatprep.subr.mxu0 0.0
        %377 = vmatpush1.msra.mxu0 0.0
        %378 = vmatprep.subr.mxu0 0.0
        %379 = vmatpush1.msra.mxu0 0.0
        %380 = vmatprep.subr.mxu0 0.0
        %381 = vmatpush1.msra.mxu0 0.0
        %382 = vmatprep.subr.mxu0 0.0
        %383 = vmatpush1.msra.mxu0 0.0
        %384 = vmatprep.subr.mxu0 0.0
        %385 = vmatpush1.msra.mxu0 0.0
        %386 = vmatprep.subr.mxu0 0.0
        %387 = vmatpush1.msra.mxu0 0.0
        %388 = vmatprep.subr.mxu0 0.0
        %389 = vmatpush1.msra.mxu0 0.0
        %390 = vmatprep.subr.mxu0 0.0
        %391 = vmatpush1.msra.mxu0 0.0
        %392 = vmatprep.subr.mxu0 0.0
        %393 = vmatpush1.msra.mxu0 0.0
        %394 = vmatprep.subr.mxu0 0.0
        %395 = vmatpush1.msra.mxu0 0.0
        %396 = vmatprep.subr.mxu0 0.0
        %397 = vmatpush1.msra.mxu0 0.0
        %398 = vmatprep.subr.mxu0 0.0
        %v399 = vand.u32 %v283, 4294901760
        %v400 = vsub.f32 %v283, %v399
        %v401 = vand.u32 %v400, 4294901760
        %v402 = vsub.f32 %v400, %v401
        %v403 = vand.u32 %v402, 4294901760
        %404 = vmatpush1.msra.mxu0 %v403
        %405 = vmatprep.subr.mxu0 0.0
        %v406 = vand.u32 %v282, 4294901760
        %v407 = vsub.f32 %v282, %v406
        %v408 = vand.u32 %v407, 4294901760
        %v409 = vsub.f32 %v407, %v408
        %v410 = vand.u32 %v409, 4294901760
        %411 = vmatpush1.msra.mxu0 %v410
        %412 = vmatprep.subr.mxu0 0.0
        %413 = vmatpush2.msra.mxu0 0.0
        %414 = vmatprep.subr.mxu0 0.0
        %415 = vmatpush2.msra.mxu0 0.0
        %416 = vmatprep.subr.mxu0 0.0
        %417 = vmatpush2.msra.mxu0 0.0
        %418 = vmatprep.subr.mxu0 0.0
        %419 = vmatpush2.msra.mxu0 0.0
        %420 = vmatprep.subr.mxu0 0.0
        %421 = vmatpush2.msra.mxu0 0.0
        %422 = vmatprep.subr.mxu0 0.0
        %423 = vmatpush2.msra.mxu0 0.0
        %424 = vmatprep.subr.mxu0 0.0
        %425 = vmatpush2.msra.mxu0 0.0
        %426 = vmatprep.subr.mxu0 0.0
        %427 = vmatpush2.msra.mxu0 0.0
        %428 = vmatprep.subr.mxu0 0.0
        %429 = vmatpush2.msra.mxu0 0.0
        %430 = vmatprep.subr.mxu0 0.0
        %431 = vmatpush2.msra.mxu0 0.0
        %432 = vmatprep.subr.mxu0 0.0
        %433 = vmatpush2.msra.mxu0 0.0
        %434 = vmatprep.subr.mxu0 0.0
        %435 = vmatpush2.msra.mxu0 0.0
        %436 = vmatprep.subr.mxu0 0.0
        %437 = vmatpush2.msra.mxu0 0.0
        %438 = vmatprep.subr.mxu0 0.0
        %439 = vmatpush2.msra.mxu0 0.0
        %440 = vmatprep.subr.mxu0 0.0
        %441 = vmatpush2.msra.mxu0 0.0
        %442 = vmatprep.subr.mxu0 0.0
        %443 = vmatpush2.msra.mxu0 0.0
        %444 = vmatprep.mubr.f32.mxu0 0.0
        %v445 = vand.u32 %v291, 4294901760
        %446 = vmatmul.mubr.f32.gmra.mxu0 %v445
        %v447 = vpop.f32.mrf.mxu0
        %v448 = vadd.f32 %v367, %v447
        %v449 = vpop.f32.mrf.mxu0
        %450 = vdwg.mxu0
        %451 = vmatprep.subr.mxu0 0.0
        %452 = vmatpush1.msra.mxu0 0.0
        %453 = vmatprep.subr.mxu0 0.0
        %454 = vmatpush1.msra.mxu0 0.0
        %455 = vmatprep.subr.mxu0 0.0
        %456 = vmatpush1.msra.mxu0 0.0
        %457 = vmatprep.subr.mxu0 0.0
        %458 = vmatpush1.msra.mxu0 0.0
        %459 = vmatprep.subr.mxu0 0.0
        %460 = vmatpush1.msra.mxu0 0.0
        %461 = vmatprep.subr.mxu0 0.0
        %462 = vmatpush1.msra.mxu0 0.0
        %463 = vmatprep.subr.mxu0 0.0
        %464 = vmatpush1.msra.mxu0 0.0
        %465 = vmatprep.subr.mxu0 0.0
        %466 = vmatpush1.msra.mxu0 0.0
        %467 = vmatprep.subr.mxu0 0.0
        %468 = vmatpush1.msra.mxu0 0.0
        %469 = vmatprep.subr.mxu0 0.0
        %470 = vmatpush1.msra.mxu0 0.0
        %471 = vmatprep.subr.mxu0 0.0
        %472 = vmatpush1.msra.mxu0 0.0
        %473 = vmatprep.subr.mxu0 0.0
        %474 = vmatpush1.msra.mxu0 0.0
        %475 = vmatprep.subr.mxu0 0.0
        %476 = vmatpush1.msra.mxu0 0.0
        %477 = vmatprep.subr.mxu0 0.0
        %478 = vmatpush1.msra.mxu0 0.0
        %479 = vmatprep.subr.mxu0 0.0
        %v480 = vand.u32 %v283, 4294901760
        %v481 = vsub.f32 %v283, %v480
        %482 = vmatpush1.msra.mxu0 %v481
        %483 = vmatprep.subr.mxu0 0.0
        %v484 = vand.u32 %v282, 4294901760
        %v485 = vsub.f32 %v282, %v484
        %486 = vmatpush1.msra.mxu0 %v485
        %487 = vmatprep.subr.mxu0 0.0
        %488 = vmatpush2.msra.mxu0 0.0
        %489 = vmatprep.subr.mxu0 0.0
        %490 = vmatpush2.msra.mxu0 0.0
        %491 = vmatprep.subr.mxu0 0.0
        %492 = vmatpush2.msra.mxu0 0.0
        %493 = vmatprep.subr.mxu0 0.0
        %494 = vmatpush2.msra.mxu0 0.0
        %495 = vmatprep.subr.mxu0 0.0
        %496 = vmatpush2.msra.mxu0 0.0
        %497 = vmatprep.subr.mxu0 0.0
        %498 = vmatpush2.msra.mxu0 0.0
        %499 = vmatprep.subr.mxu0 0.0
        %500 = vmatpush2.msra.mxu0 0.0
        %501 = vmatprep.subr.mxu0 0.0
        %502 = vmatpush2.msra.mxu0 0.0
        %503 = vmatprep.subr.mxu0 0.0
        %504 = vmatpush2.msra.mxu0 0.0
        %505 = vmatprep.subr.mxu0 0.0
        %506 = vmatpush2.msra.mxu0 0.0
        %507 = vmatprep.subr.mxu0 0.0
        %508 = vmatpush2.msra.mxu0 0.0
        %509 = vmatprep.subr.mxu0 0.0
        %510 = vmatpush2.msra.mxu0 0.0
        %511 = vmatprep.subr.mxu0 0.0
        %512 = vmatpush2.msra.mxu0 0.0
        %513 = vmatprep.subr.mxu0 0.0
        %514 = vmatpush2.msra.mxu0 0.0
        %515 = vmatprep.subr.mxu0 0.0
        %516 = vmatpush2.msra.mxu0 0.0
        %517 = vmatprep.subr.mxu0 0.0
        %518 = vmatpush2.msra.mxu0 0.0
        %519 = vmatprep.mubr.f32.mxu0 0.0
        %v520 = vand.u32 %v291, 4294901760
        %v521 = vsub.f32 %v291, %v520
        %522 = vmatmul.mubr.f32.gmra.mxu0 %v521
        %v523 = vpop.f32.mrf.mxu0
        %v524 = vadd.f32 %v448, %v523
        %v525 = vpop.f32.mrf.mxu0
        %526 = vdwg.mxu0
        %527 = vmatprep.subr.mxu0 0.0
        %528 = vmatpush1.msra.mxu0 0.0
        %529 = vmatprep.subr.mxu0 0.0
        %530 = vmatpush1.msra.mxu0 0.0
        %531 = vmatprep.subr.mxu0 0.0
        %532 = vmatpush1.msra.mxu0 0.0
        %533 = vmatprep.subr.mxu0 0.0
        %534 = vmatpush1.msra.mxu0 0.0
        %535 = vmatprep.subr.mxu0 0.0
        %536 = vmatpush1.msra.mxu0 0.0
        %537 = vmatprep.subr.mxu0 0.0
        %538 = vmatpush1.msra.mxu0 0.0
        %539 = vmatprep.subr.mxu0 0.0
        %540 = vmatpush1.msra.mxu0 0.0
        %541 = vmatprep.subr.mxu0 0.0
        %542 = vmatpush1.msra.mxu0 0.0
        %543 = vmatprep.subr.mxu0 0.0
        %544 = vmatpush1.msra.mxu0 0.0
        %545 = vmatprep.subr.mxu0 0.0
        %546 = vmatpush1.msra.mxu0 0.0
        %547 = vmatprep.subr.mxu0 0.0
        %548 = vmatpush1.msra.mxu0 0.0
        %549 = vmatprep.subr.mxu0 0.0
        %550 = vmatpush1.msra.mxu0 0.0
        %551 = vmatprep.subr.mxu0 0.0
        %552 = vmatpush1.msra.mxu0 0.0
        %553 = vmatprep.subr.mxu0 0.0
        %554 = vmatpush1.msra.mxu0 0.0
        %555 = vmatprep.subr.mxu0 0.0
        %v556 = vand.u32 %v283, 4294901760
        %557 = vmatpush1.msra.mxu0 %v556
        %558 = vmatprep.subr.mxu0 0.0
        %v559 = vand.u32 %v282, 4294901760
        %560 = vmatpush1.msra.mxu0 %v559
        %561 = vmatprep.subr.mxu0 0.0
        %562 = vmatpush2.msra.mxu0 0.0
        %563 = vmatprep.subr.mxu0 0.0
        %564 = vmatpush2.msra.mxu0 0.0
        %565 = vmatprep.subr.mxu0 0.0
        %566 = vmatpush2.msra.mxu0 0.0
        %567 = vmatprep.subr.mxu0 0.0
        %568 = vmatpush2.msra.mxu0 0.0
        %569 = vmatprep.subr.mxu0 0.0
        %570 = vmatpush2.msra.mxu0 0.0
        %571 = vmatprep.subr.mxu0 0.0
        %572 = vmatpush2.msra.mxu0 0.0
        %573 = vmatprep.subr.mxu0 0.0
        %574 = vmatpush2.msra.mxu0 0.0
        %575 = vmatprep.subr.mxu0 0.0
        %576 = vmatpush2.msra.mxu0 0.0
        %577 = vmatprep.subr.mxu0 0.0
        %578 = vmatpush2.msra.mxu0 0.0
        %579 = vmatprep.subr.mxu0 0.0
        %580 = vmatpush2.msra.mxu0 0.0
        %581 = vmatprep.subr.mxu0 0.0
        %582 = vmatpush2.msra.mxu0 0.0
        %583 = vmatprep.subr.mxu0 0.0
        %584 = vmatpush2.msra.mxu0 0.0
        %585 = vmatprep.subr.mxu0 0.0
        %586 = vmatpush2.msra.mxu0 0.0
        %587 = vmatprep.subr.mxu0 0.0
        %588 = vmatpush2.msra.mxu0 0.0
        %589 = vmatprep.subr.mxu0 0.0
        %590 = vmatpush2.msra.mxu0 0.0
        %591 = vmatprep.subr.mxu0 0.0
        %592 = vmatpush2.msra.mxu0 0.0
        %593 = vmatprep.mubr.f32.mxu0 0.0
        %v594 = vand.u32 %v291, 4294901760
        %v595 = vsub.f32 %v291, %v594
        %v596 = vand.u32 %v595, 4294901760
        %597 = vmatmul.mubr.f32.gmra.mxu0 %v596
        %v598 = vpop.f32.mrf.mxu0
        %v599 = vadd.f32 %v524, %v598
        %v600 = vpop.f32.mrf.mxu0
        %601 = vdwg.mxu0
        %602 = vmatprep.subr.mxu0 0.0
        %603 = vmatpush1.msra.mxu0 0.0
        %604 = vmatprep.subr.mxu0 0.0
        %605 = vmatpush1.msra.mxu0 0.0
        %606 = vmatprep.subr.mxu0 0.0
        %607 = vmatpush1.msra.mxu0 0.0
        %608 = vmatprep.subr.mxu0 0.0
        %609 = vmatpush1.msra.mxu0 0.0
        %610 = vmatprep.subr.mxu0 0.0
        %611 = vmatpush1.msra.mxu0 0.0
        %612 = vmatprep.subr.mxu0 0.0
        %613 = vmatpush1.msra.mxu0 0.0
        %614 = vmatprep.subr.mxu0 0.0
        %615 = vmatpush1.msra.mxu0 0.0
        %616 = vmatprep.subr.mxu0 0.0
        %617 = vmatpush1.msra.mxu0 0.0
        %618 = vmatprep.subr.mxu0 0.0
        %619 = vmatpush1.msra.mxu0 0.0
        %620 = vmatprep.subr.mxu0 0.0
        %621 = vmatpush1.msra.mxu0 0.0
        %622 = vmatprep.subr.mxu0 0.0
        %623 = vmatpush1.msra.mxu0 0.0
        %624 = vmatprep.subr.mxu0 0.0
        %625 = vmatpush1.msra.mxu0 0.0
        %626 = vmatprep.subr.mxu0 0.0
        %627 = vmatpush1.msra.mxu0 0.0
        %628 = vmatprep.subr.mxu0 0.0
        %629 = vmatpush1.msra.mxu0 0.0
        %630 = vmatprep.subr.mxu0 0.0
        %v631 = vand.u32 %v283, 4294901760
        %v632 = vsub.f32 %v283, %v631
        %v633 = vand.u32 %v632, 4294901760
        %634 = vmatpush1.msra.mxu0 %v633
        %635 = vmatprep.subr.mxu0 0.0
        %v636 = vand.u32 %v282, 4294901760
        %v637 = vsub.f32 %v282, %v636
        %v638 = vand.u32 %v637, 4294901760
        %639 = vmatpush1.msra.mxu0 %v638
        %640 = vmatprep.subr.mxu0 0.0
        %641 = vmatpush2.msra.mxu0 0.0
        %642 = vmatprep.subr.mxu0 0.0
        %643 = vmatpush2.msra.mxu0 0.0
        %644 = vmatprep.subr.mxu0 0.0
        %645 = vmatpush2.msra.mxu0 0.0
        %646 = vmatprep.subr.mxu0 0.0
        %647 = vmatpush2.msra.mxu0 0.0
        %648 = vmatprep.subr.mxu0 0.0
        %649 = vmatpush2.msra.mxu0 0.0
        %650 = vmatprep.subr.mxu0 0.0
        %651 = vmatpush2.msra.mxu0 0.0
        %652 = vmatprep.subr.mxu0 0.0
        %653 = vmatpush2.msra.mxu0 0.0
        %654 = vmatprep.subr.mxu0 0.0
        %655 = vmatpush2.msra.mxu0 0.0
        %656 = vmatprep.subr.mxu0 0.0
        %657 = vmatpush2.msra.mxu0 0.0
        %658 = vmatprep.subr.mxu0 0.0
        %659 = vmatpush2.msra.mxu0 0.0
        %660 = vmatprep.subr.mxu0 0.0
        %661 = vmatpush2.msra.mxu0 0.0
        %662 = vmatprep.subr.mxu0 0.0
        %663 = vmatpush2.msra.mxu0 0.0
        %664 = vmatprep.subr.mxu0 0.0
        %665 = vmatpush2.msra.mxu0 0.0
        %666 = vmatprep.subr.mxu0 0.0
        %667 = vmatpush2.msra.mxu0 0.0
        %668 = vmatprep.subr.mxu0 0.0
        %669 = vmatpush2.msra.mxu0 0.0
        %670 = vmatprep.subr.mxu0 0.0
        %671 = vmatpush2.msra.mxu0 0.0
        %672 = vmatprep.mubr.f32.mxu0 0.0
        %v673 = vand.u32 %v291, 4294901760
        %674 = vmatmul.mubr.f32.gmra.mxu0 %v673
        %v675 = vpop.f32.mrf.mxu0
        %v676 = vadd.f32 %v599, %v675
        %v677 = vpop.f32.mrf.mxu0
        %678 = vdwg.mxu0
        %679 = vmatprep.subr.mxu0 0.0
        %680 = vmatpush1.msra.mxu0 0.0
        %681 = vmatprep.subr.mxu0 0.0
        %682 = vmatpush1.msra.mxu0 0.0
        %683 = vmatprep.subr.mxu0 0.0
        %684 = vmatpush1.msra.mxu0 0.0
        %685 = vmatprep.subr.mxu0 0.0
        %686 = vmatpush1.msra.mxu0 0.0
        %687 = vmatprep.subr.mxu0 0.0
        %688 = vmatpush1.msra.mxu0 0.0
        %689 = vmatprep.subr.mxu0 0.0
        %690 = vmatpush1.msra.mxu0 0.0
        %691 = vmatprep.subr.mxu0 0.0
        %692 = vmatpush1.msra.mxu0 0.0
        %693 = vmatprep.subr.mxu0 0.0
        %694 = vmatpush1.msra.mxu0 0.0
        %695 = vmatprep.subr.mxu0 0.0
        %696 = vmatpush1.msra.mxu0 0.0
        %697 = vmatprep.subr.mxu0 0.0
        %698 = vmatpush1.msra.mxu0 0.0
        %699 = vmatprep.subr.mxu0 0.0
        %700 = vmatpush1.msra.mxu0 0.0
        %701 = vmatprep.subr.mxu0 0.0
        %702 = vmatpush1.msra.mxu0 0.0
        %703 = vmatprep.subr.mxu0 0.0
        %704 = vmatpush1.msra.mxu0 0.0
        %705 = vmatprep.subr.mxu0 0.0
        %706 = vmatpush1.msra.mxu0 0.0
        %707 = vmatprep.subr.mxu0 0.0
        %v708 = vand.u32 %v283, 4294901760
        %709 = vmatpush1.msra.mxu0 %v708
        %710 = vmatprep.subr.mxu0 0.0
        %v711 = vand.u32 %v282, 4294901760
        %712 = vmatpush1.msra.mxu0 %v711
        %713 = vmatprep.subr.mxu0 0.0
        %714 = vmatpush2.msra.mxu0 0.0
        %715 = vmatprep.subr.mxu0 0.0
        %716 = vmatpush2.msra.mxu0 0.0
        %717 = vmatprep.subr.mxu0 0.0
        %718 = vmatpush2.msra.mxu0 0.0
        %719 = vmatprep.subr.mxu0 0.0
        %720 = vmatpush2.msra.mxu0 0.0
        %721 = vmatprep.subr.mxu0 0.0
        %722 = vmatpush2.msra.mxu0 0.0
        %723 = vmatprep.subr.mxu0 0.0
        %724 = vmatpush2.msra.mxu0 0.0
        %725 = vmatprep.subr.mxu0 0.0
        %726 = vmatpush2.msra.mxu0 0.0
        %727 = vmatprep.subr.mxu0 0.0
        %728 = vmatpush2.msra.mxu0 0.0
        %729 = vmatprep.subr.mxu0 0.0
        %730 = vmatpush2.msra.mxu0 0.0
        %731 = vmatprep.subr.mxu0 0.0
        %732 = vmatpush2.msra.mxu0 0.0
        %733 = vmatprep.subr.mxu0 0.0
        %734 = vmatpush2.msra.mxu0 0.0
        %735 = vmatprep.subr.mxu0 0.0
        %736 = vmatpush2.msra.mxu0 0.0
        %737 = vmatprep.subr.mxu0 0.0
        %738 = vmatpush2.msra.mxu0 0.0
        %739 = vmatprep.subr.mxu0 0.0
        %740 = vmatpush2.msra.mxu0 0.0
        %741 = vmatprep.subr.mxu0 0.0
        %742 = vmatpush2.msra.mxu0 0.0
        %743 = vmatprep.subr.mxu0 0.0
        %744 = vmatpush2.msra.mxu0 0.0
        %745 = vmatprep.mubr.f32.mxu0 0.0
        %v746 = vand.u32 %v291, 4294901760
        %747 = vmatmul.mubr.f32.gmra.mxu0 %v746
        %v748 = vpop.f32.mrf.mxu0
        %v749 = vadd.f32 %v676, %v748
        %v750 = vpop.f32.mrf.mxu0
        %751 = vdwg.mxu0
        %vm752 = vcmask 261120
        %v753 = vsel %vm752, %v749, 0.0
        %754 = vadd.xlane.f32.xlu0 %v753
        %v755 = vpop.xlane.xlu0 %754
        %v756 = vrcp.pop 32.0
        %v757 = vmul.f32 %v755, %v756
        %v758 = vsub.f32 %v749, %v757
        %v759 = vmul.f32 %v758, %v758
        %v760 = vsel %vm752, %v759, 0.0
        %761 = vadd.xlane.f32.xlu0 %v760
        %v762 = vpop.xlane.xlu0 %761
        %v763 = vmul.f32 %v762, %v756
        %v764 = vadd.f32 %v763, 1e-05
        %v765 = vrsqrt.pop %v764
        %v766 = vmul.f32 %v758, %v765
        %v767 = vld [vmem:[%s3 + $0x1] sm:$0x1]
        %v768 = vlaneseq
        %v769 = vshrl.u32 %v768, 7
        %v770 = vsub.s32 0, %v769
        %v771 = vrot.slane %v767, %v770
        %v772 = vmul.f32 %v766, %v771
        %v773 = vld [vmem:[%s3 + $0x2] sm:$0x1]
        %v774 = vlaneseq
        %v775 = vshrl.u32 %v774, 7
        %v776 = vsub.s32 0, %v775
        %v777 = vrot.slane %v773, %v776
        %v778 = vadd.f32 %v772, %v777
        %v779 = vld [vmem:[%s247] sm:$0xff]
        %v781 = vsel %vm752, %v778, 0
        %v784 = vsel %vm752, %v779, 0
        %786 = vmatprep.subr.mxu0 0.0
        %787 = vmatpush1.xpose.msra.mxu0 0.0
        %788 = vmatprep.subr.mxu0 0.0
        %789 = vmatpush1.xpose.msra.mxu0 0.0
        %790 = vmatprep.subr.mxu0 0.0
        %791 = vmatpush1.xpose.msra.mxu0 0.0
        %792 = vmatprep.subr.mxu0 0.0
        %793 = vmatpush1.xpose.msra.mxu0 0.0
        %794 = vmatprep.subr.mxu0 0.0
        %795 = vmatpush1.xpose.msra.mxu0 0.0
        %796 = vmatprep.subr.mxu0 0.0
        %797 = vmatpush1.xpose.msra.mxu0 0.0
        %798 = vmatprep.subr.mxu0 0.0
        %799 = vmatpush1.xpose.msra.mxu0 0.0
        %800 = vmatprep.subr.mxu0 0.0
        %801 = vmatpush1.xpose.msra.mxu0 0.0
        %802 = vmatprep.subr.mxu0 0.0
        %803 = vmatpush1.xpose.msra.mxu0 0.0
        %804 = vmatprep.subr.mxu0 0.0
        %805 = vmatpush1.xpose.msra.mxu0 0.0
        %806 = vmatprep.subr.mxu0 0.0
        %807 = vmatpush1.xpose.msra.mxu0 0.0
        %808 = vmatprep.subr.mxu0 0.0
        %809 = vmatpush1.xpose.msra.mxu0 0.0
        %810 = vmatprep.subr.mxu0 0.0
        %811 = vmatpush1.xpose.msra.mxu0 0.0
        %812 = vmatprep.subr.mxu0 0.0
        %813 = vmatpush1.xpose.msra.mxu0 0.0
        %814 = vmatprep.subr.mxu0 0.0
        %815 = vmatpush1.xpose.msra.mxu0 0.0
        %816 = vmatprep.subr.mxu0 0.0
        %v817 = vand.u32 %v784, 4294901760
        %818 = vmatpush1.xpose.msra.mxu0 %v817
        %819 = vmatprep.subr.mxu0 0.0
        %820 = vmatpush2.xpose.msra.mxu0 0.0
        %821 = vmatprep.subr.mxu0 0.0
        %822 = vmatpush2.xpose.msra.mxu0 0.0
        %823 = vmatprep.subr.mxu0 0.0
        %824 = vmatpush2.xpose.msra.mxu0 0.0
        %825 = vmatprep.subr.mxu0 0.0
        %826 = vmatpush2.xpose.msra.mxu0 0.0
        %827 = vmatprep.subr.mxu0 0.0
        %828 = vmatpush2.xpose.msra.mxu0 0.0
        %829 = vmatprep.subr.mxu0 0.0
        %830 = vmatpush2.xpose.msra.mxu0 0.0
        %831 = vmatprep.subr.mxu0 0.0
        %832 = vmatpush2.xpose.msra.mxu0 0.0
        %833 = vmatprep.subr.mxu0 0.0
        %834 = vmatpush2.xpose.msra.mxu0 0.0
        %835 = vmatprep.subr.mxu0 0.0
        %836 = vmatpush2.xpose.msra.mxu0 0.0
        %837 = vmatprep.subr.mxu0 0.0
        %838 = vmatpush2.xpose.msra.mxu0 0.0
        %839 = vmatprep.subr.mxu0 0.0
        %840 = vmatpush2.xpose.msra.mxu0 0.0
        %841 = vmatprep.subr.mxu0 0.0
        %842 = vmatpush2.xpose.msra.mxu0 0.0
        %843 = vmatprep.subr.mxu0 0.0
        %844 = vmatpush2.xpose.msra.mxu0 0.0
        %845 = vmatprep.subr.mxu0 0.0
        %846 = vmatpush2.xpose.msra.mxu0 0.0
        %847 = vmatprep.subr.mxu0 0.0
        %848 = vmatpush2.xpose.msra.mxu0 0.0
        %849 = vmatprep.subr.mxu0 0.0
        %850 = vmatpush2.xpose.msra.mxu0 0.0
        %851 = vmatprep.mubr.f32.mxu0 0.0
        %v852 = vand.u32 %v781, 4294901760
        %v853 = vsub.f32 %v781, %v852
        %v854 = vand.u32 %v853, 4294901760
        %v855 = vsub.f32 %v853, %v854
        %v856 = vand.u32 %v855, 4294901760
        %857 = vmatmul.mubr.f32.gmra.mxu0 %v856
        %v858 = vpop.f32.mrf.mxu0
        %v859 = vadd.f32 0.0, %v858
        %v860 = vpop.f32.mrf.mxu0
        %861 = vdwg.mxu0
        %862 = vmatprep.subr.mxu0 0.0
        %863 = vmatpush1.xpose.msra.mxu0 0.0
        %864 = vmatprep.subr.mxu0 0.0
        %865 = vmatpush1.xpose.msra.mxu0 0.0
        %866 = vmatprep.subr.mxu0 0.0
        %867 = vmatpush1.xpose.msra.mxu0 0.0
        %868 = vmatprep.subr.mxu0 0.0
        %869 = vmatpush1.xpose.msra.mxu0 0.0
        %870 = vmatprep.subr.mxu0 0.0
        %871 = vmatpush1.xpose.msra.mxu0 0.0
        %872 = vmatprep.subr.mxu0 0.0
        %873 = vmatpush1.xpose.msra.mxu0 0.0
        %874 = vmatprep.subr.mxu0 0.0
        %875 = vmatpush1.xpose.msra.mxu0 0.0
        %876 = vmatprep.subr.mxu0 0.0
        %877 = vmatpush1.xpose.msra.mxu0 0.0
        %878 = vmatprep.subr.mxu0 0.0
        %879 = vmatpush1.xpose.msra.mxu0 0.0
        %880 = vmatprep.subr.mxu0 0.0
        %881 = vmatpush1.xpose.msra.mxu0 0.0
        %882 = vmatprep.subr.mxu0 0.0
        %883 = vmatpush1.xpose.msra.mxu0 0.0
        %884 = vmatprep.subr.mxu0 0.0
        %885 = vmatpush1.xpose.msra.mxu0 0.0
        %886 = vmatprep.subr.mxu0 0.0
        %887 = vmatpush1.xpose.msra.mxu0 0.0
        %888 = vmatprep.subr.mxu0 0.0
        %889 = vmatpush1.xpose.msra.mxu0 0.0
        %890 = vmatprep.subr.mxu0 0.0
        %891 = vmatpush1.xpose.msra.mxu0 0.0
        %892 = vmatprep.subr.mxu0 0.0
        %v893 = vand.u32 %v784, 4294901760
        %v894 = vsub.f32 %v784, %v893
        %v895 = vand.u32 %v894, 4294901760
        %v896 = vsub.f32 %v894, %v895
        %v897 = vand.u32 %v896, 4294901760
        %898 = vmatpush1.xpose.msra.mxu0 %v897
        %899 = vmatprep.subr.mxu0 0.0
        %900 = vmatpush2.xpose.msra.mxu0 0.0
        %901 = vmatprep.subr.mxu0 0.0
        %902 = vmatpush2.xpose.msra.mxu0 0.0
        %903 = vmatprep.subr.mxu0 0.0
        %904 = vmatpush2.xpose.msra.mxu0 0.0
        %905 = vmatprep.subr.mxu0 0.0
        %906 = vmatpush2.xpose.msra.mxu0 0.0
        %907 = vmatprep.subr.mxu0 0.0
        %908 = vmatpush2.xpose.msra.mxu0 0.0
        %909 = vmatprep.subr.mxu0 0.0
        %910 = vmatpush2.xpose.msra.mxu0 0.0
        %911 = vmatprep.subr.mxu0 0.0
        %912 = vmatpush2.xpose.msra.mxu0 0.0
        %913 = vmatprep.subr.mxu0 0.0
        %914 = vmatpush2.xpose.msra.mxu0 0.0
        %915 = vmatprep.subr.mxu0 0.0
        %916 = vmatpush2.xpose.msra.mxu0 0.0
        %917 = vmatprep.subr.mxu0 0.0
        %918 = vmatpush2.xpose.msra.mxu0 0.0
        %919 = vmatprep.subr.mxu0 0.0
        %920 = vmatpush2.xpose.msra.mxu0 0.0
        %921 = vmatprep.subr.mxu0 0.0
        %922 = vmatpush2.xpose.msra.mxu0 0.0
        %923 = vmatprep.subr.mxu0 0.0
        %924 = vmatpush2.xpose.msra.mxu0 0.0
        %925 = vmatprep.subr.mxu0 0.0
        %926 = vmatpush2.xpose.msra.mxu0 0.0
        %927 = vmatprep.subr.mxu0 0.0
        %928 = vmatpush2.xpose.msra.mxu0 0.0
        %929 = vmatprep.subr.mxu0 0.0
        %930 = vmatpush2.xpose.msra.mxu0 0.0
        %931 = vmatprep.mubr.f32.mxu0 0.0
        %v932 = vand.u32 %v781, 4294901760
        %933 = vmatmul.mubr.f32.gmra.mxu0 %v932
        %v934 = vpop.f32.mrf.mxu0
        %v935 = vadd.f32 %v859, %v934
        %v936 = vpop.f32.mrf.mxu0
        %937 = vdwg.mxu0
        %938 = vmatprep.subr.mxu0 0.0
        %939 = vmatpush1.xpose.msra.mxu0 0.0
        %940 = vmatprep.subr.mxu0 0.0
        %941 = vmatpush1.xpose.msra.mxu0 0.0
        %942 = vmatprep.subr.mxu0 0.0
        %943 = vmatpush1.xpose.msra.mxu0 0.0
        %944 = vmatprep.subr.mxu0 0.0
        %945 = vmatpush1.xpose.msra.mxu0 0.0
        %946 = vmatprep.subr.mxu0 0.0
        %947 = vmatpush1.xpose.msra.mxu0 0.0
        %948 = vmatprep.subr.mxu0 0.0
        %949 = vmatpush1.xpose.msra.mxu0 0.0
        %950 = vmatprep.subr.mxu0 0.0
        %951 = vmatpush1.xpose.msra.mxu0 0.0
        %952 = vmatprep.subr.mxu0 0.0
        %953 = vmatpush1.xpose.msra.mxu0 0.0
        %954 = vmatprep.subr.mxu0 0.0
        %955 = vmatpush1.xpose.msra.mxu0 0.0
        %956 = vmatprep.subr.mxu0 0.0
        %957 = vmatpush1.xpose.msra.mxu0 0.0
        %958 = vmatprep.subr.mxu0 0.0
        %959 = vmatpush1.xpose.msra.mxu0 0.0
        %960 = vmatprep.subr.mxu0 0.0
        %961 = vmatpush1.xpose.msra.mxu0 0.0
        %962 = vmatprep.subr.mxu0 0.0
        %963 = vmatpush1.xpose.msra.mxu0 0.0
        %964 = vmatprep.subr.mxu0 0.0
        %965 = vmatpush1.xpose.msra.mxu0 0.0
        %966 = vmatprep.subr.mxu0 0.0
        %967 = vmatpush1.xpose.msra.mxu0 0.0
        %968 = vmatprep.subr.mxu0 0.0
        %v969 = vand.u32 %v784, 4294901760
        %v970 = vsub.f32 %v784, %v969
        %971 = vmatpush1.xpose.msra.mxu0 %v970
        %972 = vmatprep.subr.mxu0 0.0
        %973 = vmatpush2.xpose.msra.mxu0 0.0
        %974 = vmatprep.subr.mxu0 0.0
        %975 = vmatpush2.xpose.msra.mxu0 0.0
        %976 = vmatprep.subr.mxu0 0.0
        %977 = vmatpush2.xpose.msra.mxu0 0.0
        %978 = vmatprep.subr.mxu0 0.0
        %979 = vmatpush2.xpose.msra.mxu0 0.0
        %980 = vmatprep.subr.mxu0 0.0
        %981 = vmatpush2.xpose.msra.mxu0 0.0
        %982 = vmatprep.subr.mxu0 0.0
        %983 = vmatpush2.xpose.msra.mxu0 0.0
        %984 = vmatprep.subr.mxu0 0.0
        %985 = vmatpush2.xpose.msra.mxu0 0.0
        %986 = vmatprep.subr.mxu0 0.0
        %987 = vmatpush2.xpose.msra.mxu0 0.0
        %988 = vmatprep.subr.mxu0 0.0
        %989 = vmatpush2.xpose.msra.mxu0 0.0
        %990 = vmatprep.subr.mxu0 0.0
        %991 = vmatpush2.xpose.msra.mxu0 0.0
        %992 = vmatprep.subr.mxu0 0.0
        %993 = vmatpush2.xpose.msra.mxu0 0.0
        %994 = vmatprep.subr.mxu0 0.0
        %995 = vmatpush2.xpose.msra.mxu0 0.0
        %996 = vmatprep.subr.mxu0 0.0
        %997 = vmatpush2.xpose.msra.mxu0 0.0
        %998 = vmatprep.subr.mxu0 0.0
        %999 = vmatpush2.xpose.msra.mxu0 0.0
        %1000 = vmatprep.subr.mxu0 0.0
        %1001 = vmatpush2.xpose.msra.mxu0 0.0
        %1002 = vmatprep.subr.mxu0 0.0
        %1003 = vmatpush2.xpose.msra.mxu0 0.0
        %1004 = vmatprep.mubr.f32.mxu0 0.0
        %v1005 = vand.u32 %v781, 4294901760
        %v1006 = vsub.f32 %v781, %v1005
        %1007 = vmatmul.mubr.f32.gmra.mxu0 %v1006
        %v1008 = vpop.f32.mrf.mxu0
        %v1009 = vadd.f32 %v935, %v1008
        %v1010 = vpop.f32.mrf.mxu0
        %1011 = vdwg.mxu0
        %1012 = vmatprep.subr.mxu0 0.0
        %1013 = vmatpush1.xpose.msra.mxu0 0.0
        %1014 = vmatprep.subr.mxu0 0.0
        %1015 = vmatpush1.xpose.msra.mxu0 0.0
        %1016 = vmatprep.subr.mxu0 0.0
        %1017 = vmatpush1.xpose.msra.mxu0 0.0
        %1018 = vmatprep.subr.mxu0 0.0
        %1019 = vmatpush1.xpose.msra.mxu0 0.0
        %1020 = vmatprep.subr.mxu0 0.0
        %1021 = vmatpush1.xpose.msra.mxu0 0.0
        %1022 = vmatprep.subr.mxu0 0.0
        %1023 = vmatpush1.xpose.msra.mxu0 0.0
        %1024 = vmatprep.subr.mxu0 0.0
        %1025 = vmatpush1.xpose.msra.mxu0 0.0
        %1026 = vmatprep.subr.mxu0 0.0
        %1027 = vmatpush1.xpose.msra.mxu0 0.0
        %1028 = vmatprep.subr.mxu0 0.0
        %1029 = vmatpush1.xpose.msra.mxu0 0.0
        %1030 = vmatprep.subr.mxu0 0.0
        %1031 = vmatpush1.xpose.msra.mxu0 0.0
        %1032 = vmatprep.subr.mxu0 0.0
        %1033 = vmatpush1.xpose.msra.mxu0 0.0
        %1034 = vmatprep.subr.mxu0 0.0
        %1035 = vmatpush1.xpose.msra.mxu0 0.0
        %1036 = vmatprep.subr.mxu0 0.0
        %1037 = vmatpush1.xpose.msra.mxu0 0.0
        %1038 = vmatprep.subr.mxu0 0.0
        %1039 = vmatpush1.xpose.msra.mxu0 0.0
        %1040 = vmatprep.subr.mxu0 0.0
        %1041 = vmatpush1.xpose.msra.mxu0 0.0
        %1042 = vmatprep.subr.mxu0 0.0
        %v1043 = vand.u32 %v784, 4294901760
        %1044 = vmatpush1.xpose.msra.mxu0 %v1043
        %1045 = vmatprep.subr.mxu0 0.0
        %1046 = vmatpush2.xpose.msra.mxu0 0.0
        %1047 = vmatprep.subr.mxu0 0.0
        %1048 = vmatpush2.xpose.msra.mxu0 0.0
        %1049 = vmatprep.subr.mxu0 0.0
        %1050 = vmatpush2.xpose.msra.mxu0 0.0
        %1051 = vmatprep.subr.mxu0 0.0
        %1052 = vmatpush2.xpose.msra.mxu0 0.0
        %1053 = vmatprep.subr.mxu0 0.0
        %1054 = vmatpush2.xpose.msra.mxu0 0.0
        %1055 = vmatprep.subr.mxu0 0.0
        %1056 = vmatpush2.xpose.msra.mxu0 0.0
        %1057 = vmatprep.subr.mxu0 0.0
        %1058 = vmatpush2.xpose.msra.mxu0 0.0
        %1059 = vmatprep.subr.mxu0 0.0
        %1060 = vmatpush2.xpose.msra.mxu0 0.0
        %1061 = vmatprep.subr.mxu0 0.0
        %1062 = vmatpush2.xpose.msra.mxu0 0.0
        %1063 = vmatprep.subr.mxu0 0.0
        %1064 = vmatpush2.xpose.msra.mxu0 0.0
        %1065 = vmatprep.subr.mxu0 0.0
        %1066 = vmatpush2.xpose.msra.mxu0 0.0
        %1067 = vmatprep.subr.mxu0 0.0
        %1068 = vmatpush2.xpose.msra.mxu0 0.0
        %1069 = vmatprep.subr.mxu0 0.0
        %1070 = vmatpush2.xpose.msra.mxu0 0.0
        %1071 = vmatprep.subr.mxu0 0.0
        %1072 = vmatpush2.xpose.msra.mxu0 0.0
        %1073 = vmatprep.subr.mxu0 0.0
        %1074 = vmatpush2.xpose.msra.mxu0 0.0
        %1075 = vmatprep.subr.mxu0 0.0
        %1076 = vmatpush2.xpose.msra.mxu0 0.0
        %1077 = vmatprep.mubr.f32.mxu0 0.0
        %v1078 = vand.u32 %v781, 4294901760
        %v1079 = vsub.f32 %v781, %v1078
        %v1080 = vand.u32 %v1079, 4294901760
        %1081 = vmatmul.mubr.f32.gmra.mxu0 %v1080
        %v1082 = vpop.f32.mrf.mxu0
        %v1083 = vadd.f32 %v1009, %v1082
        %v1084 = vpop.f32.mrf.mxu0
        %1085 = vdwg.mxu0
        %1086 = vmatprep.subr.mxu0 0.0
        %1087 = vmatpush1.xpose.msra.mxu0 0.0
        %1088 = vmatprep.subr.mxu0 0.0
        %1089 = vmatpush1.xpose.msra.mxu0 0.0
        %1090 = vmatprep.subr.mxu0 0.0
        %1091 = vmatpush1.xpose.msra.mxu0 0.0
        %1092 = vmatprep.subr.mxu0 0.0
        %1093 = vmatpush1.xpose.msra.mxu0 0.0
        %1094 = vmatprep.subr.mxu0 0.0
        %1095 = vmatpush1.xpose.msra.mxu0 0.0
        %1096 = vmatprep.subr.mxu0 0.0
        %1097 = vmatpush1.xpose.msra.mxu0 0.0
        %1098 = vmatprep.subr.mxu0 0.0
        %1099 = vmatpush1.xpose.msra.mxu0 0.0
        %1100 = vmatprep.subr.mxu0 0.0
        %1101 = vmatpush1.xpose.msra.mxu0 0.0
        %1102 = vmatprep.subr.mxu0 0.0
        %1103 = vmatpush1.xpose.msra.mxu0 0.0
        %1104 = vmatprep.subr.mxu0 0.0
        %1105 = vmatpush1.xpose.msra.mxu0 0.0
        %1106 = vmatprep.subr.mxu0 0.0
        %1107 = vmatpush1.xpose.msra.mxu0 0.0
        %1108 = vmatprep.subr.mxu0 0.0
        %1109 = vmatpush1.xpose.msra.mxu0 0.0
        %1110 = vmatprep.subr.mxu0 0.0
        %1111 = vmatpush1.xpose.msra.mxu0 0.0
        %1112 = vmatprep.subr.mxu0 0.0
        %1113 = vmatpush1.xpose.msra.mxu0 0.0
        %1114 = vmatprep.subr.mxu0 0.0
        %1115 = vmatpush1.xpose.msra.mxu0 0.0
        %1116 = vmatprep.subr.mxu0 0.0
        %v1117 = vand.u32 %v784, 4294901760
        %v1118 = vsub.f32 %v784, %v1117
        %v1119 = vand.u32 %v1118, 4294901760
        %1120 = vmatpush1.xpose.msra.mxu0 %v1119
        %1121 = vmatprep.subr.mxu0 0.0
        %1122 = vmatpush2.xpose.msra.mxu0 0.0
        %1123 = vmatprep.subr.mxu0 0.0
        %1124 = vmatpush2.xpose.msra.mxu0 0.0
        %1125 = vmatprep.subr.mxu0 0.0
        %1126 = vmatpush2.xpose.msra.mxu0 0.0
        %1127 = vmatprep.subr.mxu0 0.0
        %1128 = vmatpush2.xpose.msra.mxu0 0.0
        %1129 = vmatprep.subr.mxu0 0.0
        %1130 = vmatpush2.xpose.msra.mxu0 0.0
        %1131 = vmatprep.subr.mxu0 0.0
        %1132 = vmatpush2.xpose.msra.mxu0 0.0
        %1133 = vmatprep.subr.mxu0 0.0
        %1134 = vmatpush2.xpose.msra.mxu0 0.0
        %1135 = vmatprep.subr.mxu0 0.0
        %1136 = vmatpush2.xpose.msra.mxu0 0.0
        %1137 = vmatprep.subr.mxu0 0.0
        %1138 = vmatpush2.xpose.msra.mxu0 0.0
        %1139 = vmatprep.subr.mxu0 0.0
        %1140 = vmatpush2.xpose.msra.mxu0 0.0
        %1141 = vmatprep.subr.mxu0 0.0
        %1142 = vmatpush2.xpose.msra.mxu0 0.0
        %1143 = vmatprep.subr.mxu0 0.0
        %1144 = vmatpush2.xpose.msra.mxu0 0.0
        %1145 = vmatprep.subr.mxu0 0.0
        %1146 = vmatpush2.xpose.msra.mxu0 0.0
        %1147 = vmatprep.subr.mxu0 0.0
        %1148 = vmatpush2.xpose.msra.mxu0 0.0
        %1149 = vmatprep.subr.mxu0 0.0
        %1150 = vmatpush2.xpose.msra.mxu0 0.0
        %1151 = vmatprep.subr.mxu0 0.0
        %1152 = vmatpush2.xpose.msra.mxu0 0.0
        %1153 = vmatprep.mubr.f32.mxu0 0.0
        %v1154 = vand.u32 %v781, 4294901760
        %1155 = vmatmul.mubr.f32.gmra.mxu0 %v1154
        %v1156 = vpop.f32.mrf.mxu0
        %v1157 = vadd.f32 %v1083, %v1156
        %v1158 = vpop.f32.mrf.mxu0
        %1159 = vdwg.mxu0
        %1160 = vmatprep.subr.mxu0 0.0
        %1161 = vmatpush1.xpose.msra.mxu0 0.0
        %1162 = vmatprep.subr.mxu0 0.0
        %1163 = vmatpush1.xpose.msra.mxu0 0.0
        %1164 = vmatprep.subr.mxu0 0.0
        %1165 = vmatpush1.xpose.msra.mxu0 0.0
        %1166 = vmatprep.subr.mxu0 0.0
        %1167 = vmatpush1.xpose.msra.mxu0 0.0
        %1168 = vmatprep.subr.mxu0 0.0
        %1169 = vmatpush1.xpose.msra.mxu0 0.0
        %1170 = vmatprep.subr.mxu0 0.0
        %1171 = vmatpush1.xpose.msra.mxu0 0.0
        %1172 = vmatprep.subr.mxu0 0.0
        %1173 = vmatpush1.xpose.msra.mxu0 0.0
        %1174 = vmatprep.subr.mxu0 0.0
        %1175 = vmatpush1.xpose.msra.mxu0 0.0
        %1176 = vmatprep.subr.mxu0 0.0
        %1177 = vmatpush1.xpose.msra.mxu0 0.0
        %1178 = vmatprep.subr.mxu0 0.0
        %1179 = vmatpush1.xpose.msra.mxu0 0.0
        %1180 = vmatprep.subr.mxu0 0.0
        %1181 = vmatpush1.xpose.msra.mxu0 0.0
        %1182 = vmatprep.subr.mxu0 0.0
        %1183 = vmatpush1.xpose.msra.mxu0 0.0
        %1184 = vmatprep.subr.mxu0 0.0
        %1185 = vmatpush1.xpose.msra.mxu0 0.0
        %1186 = vmatprep.subr.mxu0 0.0
        %1187 = vmatpush1.xpose.msra.mxu0 0.0
        %1188 = vmatprep.subr.mxu0 0.0
        %1189 = vmatpush1.xpose.msra.mxu0 0.0
        %1190 = vmatprep.subr.mxu0 0.0
        %v1191 = vand.u32 %v784, 4294901760
        %1192 = vmatpush1.xpose.msra.mxu0 %v1191
        %1193 = vmatprep.subr.mxu0 0.0
        %1194 = vmatpush2.xpose.msra.mxu0 0.0
        %1195 = vmatprep.subr.mxu0 0.0
        %1196 = vmatpush2.xpose.msra.mxu0 0.0
        %1197 = vmatprep.subr.mxu0 0.0
        %1198 = vmatpush2.xpose.msra.mxu0 0.0
        %1199 = vmatprep.subr.mxu0 0.0
        %1200 = vmatpush2.xpose.msra.mxu0 0.0
        %1201 = vmatprep.subr.mxu0 0.0
        %1202 = vmatpush2.xpose.msra.mxu0 0.0
        %1203 = vmatprep.subr.mxu0 0.0
        %1204 = vmatpush2.xpose.msra.mxu0 0.0
        %1205 = vmatprep.subr.mxu0 0.0
        %1206 = vmatpush2.xpose.msra.mxu0 0.0
        %1207 = vmatprep.subr.mxu0 0.0
        %1208 = vmatpush2.xpose.msra.mxu0 0.0
        %1209 = vmatprep.subr.mxu0 0.0
        %1210 = vmatpush2.xpose.msra.mxu0 0.0
        %1211 = vmatprep.subr.mxu0 0.0
        %1212 = vmatpush2.xpose.msra.mxu0 0.0
        %1213 = vmatprep.subr.mxu0 0.0
        %1214 = vmatpush2.xpose.msra.mxu0 0.0
        %1215 = vmatprep.subr.mxu0 0.0
        %1216 = vmatpush2.xpose.msra.mxu0 0.0
        %1217 = vmatprep.subr.mxu0 0.0
        %1218 = vmatpush2.xpose.msra.mxu0 0.0
        %1219 = vmatprep.subr.mxu0 0.0
        %1220 = vmatpush2.xpose.msra.mxu0 0.0
        %1221 = vmatprep.subr.mxu0 0.0
        %1222 = vmatpush2.xpose.msra.mxu0 0.0
        %1223 = vmatprep.subr.mxu0 0.0
        %1224 = vmatpush2.xpose.msra.mxu0 0.0
        %1225 = vmatprep.mubr.f32.mxu0 0.0
        %v1226 = vand.u32 %v781, 4294901760
        %1227 = vmatmul.mubr.f32.gmra.mxu0 %v1226
        %v1228 = vpop.f32.mrf.mxu0
        %v1229 = vadd.f32 %v1157, %v1228
        %v1230 = vpop.f32.mrf.mxu0
        %1231 = vdwg.mxu0
        %vm1232 = vcmask 64512
        %v1233 = vsel %vm1232, %v1229, -inf
        %1234 = vmax.xlane.f32.xlu0 %v1233
        %v1235 = vpop.xlane.xlu0 %1234
        %v1236 = vsub.f32 %v1229, %v1235
        %v1237 = vmul.f32 %v1236, 1.442695
        %v1238 = vpow.pop %v1237
        %v1239 = vsel %vm1232, %v1238, 0.0
        %1240 = vadd.xlane.f32.xlu0 %v1239
        %v1241 = vpop.xlane.xlu0 %1240
        %v1242 = vrcp.pop %v1241
        %v1243 = vmul.f32 %v1238, %v1242
        %1244 = vst.msk [vmem:[%s280] sm:$0xff] %vm1232, %v1243
        %s1245 = sand.u32 %s142, 1
        %s1246 = scalar_lea.sflag [#allocation4], %s1245
        %s1247 = sand.u32 %s142, 1
        %s1248 = smul.addr %s1247, 8
        %s1249 = scalar_lea.vmem [#allocation8], %s1248
        // Predicated region
        $region49: #{tpu_custom_call.1} parent=35 // pred_check
          %p1250 = pneg %p152
        $region50: #{tpu_custom_call.1} parent=35 // pred_check_branch
          %1252 = sbr.rel (%p1250) target = $region52
        $region51: #{tpu_custom_call.1} parent=35 // pred_region
          %s1254 = ssub.s32 128, 128
          %1255 = vsyncadd %s1246, %s1254
          %s1256 = sadd.s32 %s29, %s28
          %s1257 = smul.addr %s1256, 128
          %s1258 = scalar_lea.hbm %s4, %s1257
          %s1260 = sshll.u32 %s1249, 4
          %s1261 = int_to_ptr.vmem [resolvable:$true] %s1260
          %1263 = dma.vmem_to_hbm [thread:$0]  %s1261, 128, %s1258, %s1246
        $region52: #{tpu_custom_call.1} parent=35 // pred_fallthru
          _
      $region36: #{tpu_custom_call.1} parent=5 // pred_fallthru
        _
      %p1264 = scmp.le.s32.totalorder 2, %s19
      // Predicated region
      $region53: #{tpu_custom_call.1} parent=5 // pred_check
        %p1265 = pneg %p1264
      $region54: #{tpu_custom_call.1} parent=5 // pred_check_branch
        %1267 = sbr.rel (%p1265) target = $region56
      $region55: #{tpu_custom_call.1} parent=5 // pred_region
        %s1268 = ssub.s32 %s19, 2
        // Predicated region
        $region57: #{tpu_custom_call.1} parent=55 // pred_check
          %p1269 = pneg %p158
        $region58: #{tpu_custom_call.1} parent=55 // pred_check_branch
          %1271 = sbr.rel (%p1269) target = $region60
        $region59: #{tpu_custom_call.1} parent=55 // pred_region
          %s1272 = sand.u32 %s143, 1
          %s1273 = scalar_lea.sflag [#allocation4], %s1272
          %s1274 = sand.u32 %s143, 1
          %s1275 = smul.addr %s1274, 8
          %s1276 = scalar_lea.vmem [#allocation8], %s1275
          %1277 = dma.done %s1273, 128
        $region60: #{tpu_custom_call.1} parent=55 // pred_fallthru
          _
      $region56: #{tpu_custom_call.1} parent=5 // pred_fallthru
        _
    $region6: #{tpu_custom_call.1} parent=1 // loop_footer
      %s23 = sadd.s32 1, %s19
    $region7: #{tpu_custom_call.1} parent=1 // loop_footer_branch
      %18 = sbr.rel target = $region3
    $region8: #{tpu_custom_call.1} parent=1 // loop_exit
      _
    %1278 = vsyncpa [#allocation3], 1
    %s1279 = scalar_lea.sflag [#allocation3], 1
    %1280 = vsyncpa %s1279, 1
    %1281 = vsyncpa [#allocation6], 1
    %s1282 = scalar_lea.sflag [#allocation6], 1
    %1283 = vsyncpa %s1282, 1
    %1284 = vsyncpa [#allocation4], 1
    %s1285 = scalar_lea.sflag [#allocation4], 1
    %1286 = vsyncpa %s1285, 1

</llo_original>
